<compile_context>
chip_gen: v5e
topology: v5e:2x2
jax: 0.10.0
libtpu: 0.0.40
codegen_flags: <defaults>
</compile_context>

<pallas_src>
import jax
import jax.numpy as jnp
from jax.experimental import pallas as pl
from jax.experimental.pallas import tpu as pltpu

LANE = 128            # lane width; out_features padded to a multiple of this
SUBLANE = 8           # f32 sublane granule; batch padded to a multiple of this
VPU_MAX_IN_F = 16     # contractions this small stay on the VPU (no MXU)

# Default tile plan (f32). Sized so acc + double-buffered x + W + out tiles
# stay well inside v7x's 64 MiB VMEM/TC; v5e/v6e (128 MiB) have headroom.
TILE_B = 512
TILE_N = 512
TILE_K = 512
VMEM_LIMIT_BYTES = 48 * 1024 * 1024


def _round_up(x: int, m: int) -> int:
    return ((x + m - 1) // m) * m


# --------------------------------------------------------------------------
# VPU path: tiny in_f. y = sum_k x[:, k] * w[k, :] + b  (pure multiply-add).
# --------------------------------------------------------------------------
def _vpu_linear_kernel(x_ref, w_ref, b_ref, o_ref):
    # x_ref: (tb, in_f)   w_ref: (in_f, tn)   b_ref: (1, tn)   o_ref: (tb, tn)
    x = x_ref[...].astype(jnp.float32)
    w = w_ref[...].astype(jnp.float32)
    acc = jnp.zeros((x.shape[0], w.shape[1]), jnp.float32)
    for k in range(x.shape[1]):               # static, tiny unroll (in_f <= 16)
        acc = acc + x[:, k:k + 1] * w[k:k + 1, :]
    o_ref[...] = (acc + b_ref[...].astype(jnp.float32)).astype(o_ref.dtype)


# --------------------------------------------------------------------------
# MXU path: general shapes, (batch, N, K) grid with f32 accumulator scratch.
# --------------------------------------------------------------------------
def _mxu_linear_kernel(x_ref, w_ref, b_ref, o_ref, acc_ref):
    kk = pl.program_id(2)

    @pl.when(kk == 0)
    def _():
        acc_ref[...] = jnp.zeros_like(acc_ref)

    # W is stored (K, N): contract dim 1 of x with dim 0 of W -> no in-kernel
    # transpose / relayout, MXU consumes both operands natively.
    acc_ref[...] += jax.lax.dot_general(
        x_ref[...], w_ref[...],
        dimension_numbers=(((1,), (0,)), ((), ())),
        preferred_element_type=jnp.float32,
    )

    @pl.when(kk == pl.num_programs(2) - 1)
    def _():
        o_ref[...] = (acc_ref[...] + b_ref[...]).astype(o_ref.dtype)


def linear_forward(x, w_kn, b_row, out_f, *,
                   tile_b: int = TILE_B,
                   tile_n: int = TILE_N,
                   tile_k: int = TILE_K):
    """y = x @ W + b with W pre-transposed/padded to (in_f, out_p), b (1, out_p).

    x: (B, in_f) -> returns (B, out_f).
    """
    B, in_f = x.shape
    k_dim, out_p = w_kn.shape
    assert k_dim == in_f, "weight K dim must match x features"

    # Pad the batch only to the sublane granule (8) — no full re-pad to tile_b.
    Bp = _round_up(max(B, SUBLANE), SUBLANE)
    if Bp != B:
        x = jnp.zeros((Bp, in_f), x.dtype).at[:B, :].set(x)

    tb = min(tile_b, Bp)                      # both multiples of 8 -> tb is too
    tn = min(tile_n, out_p)                   # both multiples of 128
    grid_b = pl.cdiv(Bp, tb)
    grid_n = pl.cdiv(out_p, tn)

    if in_f <= VPU_MAX_IN_F:
        # ---- VPU path (the actual nn.Linear(2, 1) shape lands here) ----
        out = pl.pallas_call(
            _vpu_linear_kernel,
            out_shape=jax.ShapeDtypeStruct((Bp, out_p), x.dtype),
            grid=(grid_b, grid_n),
            in_specs=[
                pl.BlockSpec((tb, in_f), lambda i, j: (i, 0)),
                pl.BlockSpec((in_f, tn), lambda i, j: (0, j)),
                pl.BlockSpec((1, tn), lambda i, j: (0, j)),
            ],
            out_specs=pl.BlockSpec((tb, tn), lambda i, j: (i, j)),
            compiler_params=pltpu.CompilerParams(
                dimension_semantics=("parallel", "parallel"),
                vmem_limit_bytes=VMEM_LIMIT_BYTES,
            ),
        )(x, w_kn, b_row)
    else:
        # ---- MXU path: tiled K with accumulator ----
        # TODO(synk): if in_f is huge and not a multiple of tile_k, pad the K
        # dim of W once at init; here we fall back to a resident K instead.
        tk = tile_k if in_f % tile_k == 0 else in_f
        grid_k = pl.cdiv(in_f, tk)
        out = pl.pallas_call(
            _mxu_linear_kernel,
            out_shape=jax.ShapeDtypeStruct((Bp, out_p), x.dtype),
            grid=(grid_b, grid_n, grid_k),
            in_specs=[
                pl.BlockSpec((tb, tk), lambda i, j, k: (i, k)),
                pl.BlockSpec((tk, tn), lambda i, j, k: (k, j)),
                pl.BlockSpec((1, tn), lambda i, j, k: (0, j)),
            ],
            out_specs=pl.BlockSpec((tb, tn), lambda i, j, k: (i, j)),
            scratch_shapes=[pltpu.VMEM((tb, tn), jnp.float32)],
            compiler_params=pltpu.CompilerParams(
                dimension_semantics=("parallel", "parallel", "arbitrary"),
                vmem_limit_bytes=VMEM_LIMIT_BYTES,
            ),
        )(x, w_kn, b_row)

    return out[:B, :out_f]


class LinearPerceptron:
    """JAX/Pallas equivalent of the PyTorch LinearPerceptron (nn.Linear(2, 1))."""

    IN_F = 2
    OUT_F = 1

    def __init__(self, key):
        in_f, out_f = self.IN_F, self.OUT_F
        kw, kb = jax.random.split(key)
        bound = 1.0 / jnp.sqrt(in_f)          # PyTorch default init range
        # PyTorch-layout parameters (kept for reference / checkpoint loading).
        self.w = jax.random.uniform(kw, (out_f, in_f), jnp.float32, -bound, bound)
        self.b = jax.random.uniform(kb, (out_f,), jnp.float32, -bound, bound)

        # One-time kernel-layout prep (NOT per call): W transposed to (K, N)
        # and N padded to a multiple of 128 lanes; bias as a (1, N) row.
        out_p = _round_up(out_f, LANE)
        self.w_kn = (jnp.zeros((in_f, out_p), jnp.float32)
                     .at[:, :out_f].set(self.w.T))
        self.b_row = (jnp.zeros((1, out_p), jnp.float32)
                      .at[:, :out_f].set(self.b))

    def __call__(self, x):
        return linear_forward(x, self.w_kn, self.b_row, self.OUT_F)


if __name__ == "__main__":
    key = jax.random.PRNGKey(0)
    k_param, k_x = jax.random.split(key)

    model = LinearPerceptron(k_param)

    batch = 8
    x = jax.random.normal(k_x, (batch, 2), jnp.float32)

    out = model(x)
    out = jax.block_until_ready(out)

    # Reference check against plain JAX nn.Linear semantics: y = x @ W^T + b.
    ref = x @ model.w.T + model.b[None, :]
    assert out.shape == (batch, 1)
    assert jnp.allclose(out, ref, atol=1e-5), "mismatch vs reference"

    print("KERNEL_OK")
</pallas_src>

<mosaic_0001>
module attributes {stable_mosaic.version = 11 : i64} {
  func.func @_vpu_linear_kernel(%arg0: i32, %arg1: i32, %arg2: memref<8x2xf32, #tpu.memory_space<vmem>>, %arg3: memref<2x128xf32, #tpu.memory_space<vmem>>, %arg4: memref<1x128xf32, #tpu.memory_space<vmem>>, %arg5: memref<8x128xf32, #tpu.memory_space<vmem>>) attributes {dimension_semantics = [#tpu.dimension_semantics<parallel>, #tpu.dimension_semantics<parallel>], iteration_bounds = array<i64: 1, 1>, scalar_prefetch = 0 : i64, scratch_operands = 0 : i64, tpu.core_type = #tpu.core_type<tc>, window_params = [{transform_indices = @transform_0, window_bounds = array<i64: 8, 2>}, {transform_indices = @transform_1, window_bounds = array<i64: 2, 128>}, {transform_indices = @transform_2, window_bounds = array<i64: 1, 128>}, {transform_indices = @transform_3, window_bounds = array<i64: 8, 128>}]} {
    %c0 = arith.constant 0 : index
    %c0_0 = arith.constant 0 : index
    %0 = vector.load %arg2[%c0, %c0_0] : memref<8x2xf32, #tpu.memory_space<vmem>>, vector<8x2xf32>
    %c0_1 = arith.constant 0 : index
    %c0_2 = arith.constant 0 : index
    %1 = vector.load %arg3[%c0_1, %c0_2] : memref<2x128xf32, #tpu.memory_space<vmem>>, vector<2x128xf32>
    %cst = arith.constant 0.000000e+00 : f32
    %2 = vector.broadcast %cst : f32 to vector<8x128xf32>
    %3 = vector.extract_strided_slice %0 {offsets = [0, 0], sizes = [8, 1], strides = [1, 1]} : vector<8x2xf32> to vector<8x1xf32>
    %4 = vector.extract_strided_slice %1 {offsets = [0, 0], sizes = [1, 128], strides = [1, 1]} : vector<2x128xf32> to vector<1x128xf32>
    %5 = vector.broadcast %3 : vector<8x1xf32> to vector<8x128xf32>
    %6 = vector.broadcast %4 : vector<1x128xf32> to vector<8x128xf32>
    %7 = arith.mulf %5, %6 : vector<8x128xf32>
    %8 = arith.addf %2, %7 : vector<8x128xf32>
    %9 = vector.extract_strided_slice %0 {offsets = [0, 1], sizes = [8, 1], strides = [1, 1]} : vector<8x2xf32> to vector<8x1xf32>
    %10 = vector.extract_strided_slice %1 {offsets = [1, 0], sizes = [1, 128], strides = [1, 1]} : vector<2x128xf32> to vector<1x128xf32>
    %11 = vector.broadcast %9 : vector<8x1xf32> to vector<8x128xf32>
    %12 = vector.broadcast %10 : vector<1x128xf32> to vector<8x128xf32>
    %13 = arith.mulf %11, %12 : vector<8x128xf32>
    %14 = arith.addf %8, %13 : vector<8x128xf32>
    %c0_3 = arith.constant 0 : index
    %c0_4 = arith.constant 0 : index
    %15 = vector.load %arg4[%c0_3, %c0_4] : memref<1x128xf32, #tpu.memory_space<vmem>>, vector<1x128xf32>
    %16 = vector.broadcast %15 : vector<1x128xf32> to vector<8x128xf32>
    %17 = arith.addf %14, %16 : vector<8x128xf32>
    %c0_5 = arith.constant 0 : index
    %c0_6 = arith.constant 0 : index
    %18 = vector.load %arg5[%c0_5, %c0_6] : memref<8x128xf32, #tpu.memory_space<vmem>>, vector<8x128xf32>
    tpu.vector_store %arg5[%c0_5, %c0_6], %17 {strides = array<i32>} : memref<8x128xf32, #tpu.memory_space<vmem>>, vector<8x128xf32>,
    return
  }
  func.func @transform_0(%arg0: i32, %arg1: i32) -> (i32, i32) {
    %c0_i32 = arith.constant 0 : i32
    %c0_i32_0 = arith.constant 0 : i32
    return %arg0, %c0_i32 : i32, i32
  }
  func.func @transform_1(%arg0: i32, %arg1: i32) -> (i32, i32) {
    %c0_i32 = arith.constant 0 : i32
    %c0_i32_0 = arith.constant 0 : i32
    return %c0_i32, %arg1 : i32, i32
  }
  func.func @transform_2(%arg0: i32, %arg1: i32) -> (i32, i32) {
    %c0_i32 = arith.constant 0 : i32
    %c0_i32_0 = arith.constant 0 : i32
    return %c0_i32, %arg1 : i32, i32
  }
  func.func @transform_3(%arg0: i32, %arg1: i32) -> (i32, i32) {
    %c0_i32 = arith.constant 0 : i32
    return %arg0, %arg1 : i32, i32
  }
}

</mosaic_0001>

<llo_original>
// kernel: tpu_custom_call.1
$region0: #{tpu_custom_call.1}
  #allocation0 [shape = 'u32[]', space=smem, size = 0x4, offset = 0x4, fixed_abs, tag = 'smem constant byte address 0x4 - core index']
  #allocation1 [shape = 'u32[72,128]{1,0:T(1,128)}', space=vmem, size = 0x9000, scoped, tag = 'internal scratch']
  %s0 = inlined_call_operand.vmem [shape: f32[8,2], index: 0, kind: input, shape index: {}]
  %s1 = inlined_call_operand.vmem [shape: f32[2,128], index: 1, kind: input, shape index: {}]
  %s2 = inlined_call_operand.vmem [shape: f32[1,128], index: 2, kind: input, shape index: {}]
  %s3 = inlined_call_operand.hbm [shape: f32[8,128], index: 3, kind: output, shape index: {}]
  %s4 = sld [smem:[#allocation0]]
  $region22: #{tpu_custom_call.1} parent=0
    _
  %s6 = ssub.s32 1, %s4
  %s7 = scalar_select 0, %s6, %s4
  $region1: #{tpu_custom_call.1} parent=0
    #allocation2 [shape = 'u8[4096]{0}', space=vmem, size = 0x1000, scoped, tag = 'output window, operand 0, single buffered']
    #allocation3 [shape = 's32[1]{0}', space=sflag, size = 0x4, scoped, tag = 'scoped memory for tpu_custom_call.1']
    %8 = vsyncpa [#allocation3], 0
    // Predicated region
    $region2: #{tpu_custom_call.1} parent=1 // pred_check
      _
    $region3: #{tpu_custom_call.1} parent=1 // pred_check_branch
      %10 = sbr.rel (0) target = $region5
    $region4: #{tpu_custom_call.1} parent=1 // pred_region
      _
    $region5: #{tpu_custom_call.1} parent=1 // pred_fallthru
      _
    // Predicated region
    $region6: #{tpu_custom_call.1} parent=1 // pred_check
      _
    $region7: #{tpu_custom_call.1} parent=1 // pred_check_branch
      %12 = sbr.rel (0) target = $region9
    $region8: #{tpu_custom_call.1} parent=1 // pred_region
      _
    $region9: #{tpu_custom_call.1} parent=1 // pred_fallthru
      _
    // Predicated region
    $region10: #{tpu_custom_call.1} parent=1 // pred_check
      _
    $region11: #{tpu_custom_call.1} parent=1 // pred_check_branch
      %14 = sbr.rel (0) target = $region13
    $region12: #{tpu_custom_call.1} parent=1 // pred_region
      _
    $region13: #{tpu_custom_call.1} parent=1 // pred_fallthru
      _
    %v15 = vld [vmem:[%s0] sm:$0xff]
    %v16 = vld [vmem:[%s1] sm:$0x3]
    %18 = vset.pattern.permute.xlu0 0
    %19 = vperm.xlu0 %18, %v15
    %v20 = vpop.permute.xlu0 %19
    %v22 = vperm.slane %v16, 0
    %v23 = vmul.f32 %v20, %v22
    %v24 = vadd.f32 %v23, 0.0
    %25 = vset.pattern.permute.xlu0 1
    %26 = vperm.xlu0 %25, %v15
    %v27 = vpop.permute.xlu0 %26
    %v29 = vperm.slane %v16, 1
    %v30 = vmul.f32 %v27, %v29
    %v31 = vadd.f32 %v24, %v30
    %v32 = vld [vmem:[%s2] sm:$0x1]
    %v34 = vperm.slane %v32, 0
    %v36 = vadd.f32 %v31, %v34
    %37 = vst [vmem:[#allocation2] sm:$0xff] %v36
    // Predicated region
    $region14: #{tpu_custom_call.1} parent=1 // pred_check
      _
    $region15: #{tpu_custom_call.1} parent=1 // pred_check_branch
      %39 = sbr.rel (0) target = $region17
    $region16: #{tpu_custom_call.1} parent=1 // pred_region
      %41 = vsyncadd [#allocation3], 0
      %s43 = sshll.u32 [#allocation2], 4
      %s44 = int_to_ptr.vmem [resolvable:$true] %s43
      %s45 = sshll.u32 %s3, 4
      %s46 = int_to_ptr.hbm [resolvable:$true] %s45
      %48 = dma.vmem_to_hbm [thread:$0]  %s44, 128, %s46, [#allocation3]
    $region17: #{tpu_custom_call.1} parent=1 // pred_fallthru
      _
    // Predicated region
    $region18: #{tpu_custom_call.1} parent=1 // pred_check
      _
    $region19: #{tpu_custom_call.1} parent=1 // pred_check_branch
      %50 = sbr.rel (0) target = $region21
    $region20: #{tpu_custom_call.1} parent=1 // pred_region
      %52 = dma.done [#allocation3], 128
    $region21: #{tpu_custom_call.1} parent=1 // pred_fallthru
      _
    %53 = vsyncpa [#allocation3], 1

</llo_original>
